<compile_context>
chip_gen: v6e
topology: v6e:2x2x1
jax: 0.10.0
libtpu: 0.0.40
codegen_flags: <defaults>
</compile_context>

<pallas_src>
import functools

import jax
import jax.numpy as jnp
import numpy as np
from jax import lax
from jax.experimental import pallas as pl
from jax.experimental.pallas import tpu as pltpu


def _round_up(x, m):
    return ((x + m - 1) // m) * m


def _round_down(x, m):
    return (x // m) * m


def _default_compute_dtype():
    """bf16 in-kernel elementwise math on chips with a bf16 VPU (v6e/v7x)."""
    try:
        kind = jax.devices()[0].device_kind.lower()
    except Exception:
        return jnp.float32
    return jnp.bfloat16 if ("v6" in kind or "v7" in kind) else jnp.float32


# --------------------------------------------------------------------------- #
# Kernels
# --------------------------------------------------------------------------- #
def _edge_score_stream_kernel(xs_ref, xd_ref, w2_ref, o_ref, *, compute_dtype):
    # xs_ref / xd_ref : (H, TE) bf16  -- gathered per-edge W1 projections (lanes = edges)
    # w2_ref          : (1, H)  compute_dtype
    # o_ref           : (1, TE) f32   -- lane-dense per-edge scores (b2 added outside)
    xs = xs_ref[...].astype(compute_dtype)
    xd = xd_ref[...].astype(compute_dtype)
    hid = jnp.maximum(xs + xd, 0).astype(compute_dtype)       # relu(W1 @ [h_s; h_d] + b1)
    # H-reduction on the MXU (idle otherwise) instead of VALU broadcast + XLU sum.
    o_ref[...] = jnp.dot(w2_ref[...], hid, preferred_element_type=jnp.float32)


def _edge_score_onehot_kernel(src_ref, dst_ref, ps_ref, pd_ref, w2_ref, o_ref):
    # src_ref / dst_ref : (1, TE)  int32 edge endpoints (tail lanes may be garbage)
    # ps_ref / pd_ref   : (H, Np)  bf16 per-node W1 projections, VMEM-resident
    # w2_ref            : (1, H)   f32
    # o_ref             : (1, TE)  f32
    n_pad = ps_ref.shape[1]
    te = src_ref.shape[1]
    ids = lax.broadcasted_iota(jnp.int32, (n_pad, te), 0)
    oh_s = (ids == src_ref[...]).astype(ps_ref.dtype)          # (Np, TE) one-hot columns
    oh_d = (ids == dst_ref[...]).astype(pd_ref.dtype)
    xs = jnp.dot(ps_ref[...], oh_s, preferred_element_type=jnp.float32)   # gather on MXU
    xd = jnp.dot(pd_ref[...], oh_d, preferred_element_type=jnp.float32)
    hid = jnp.maximum(xs + xd, 0.0)
    o_ref[...] = jnp.dot(w2_ref[...], hid, preferred_element_type=jnp.float32)


# --------------------------------------------------------------------------- #
# Wrapper
# --------------------------------------------------------------------------- #
@functools.partial(
    jax.jit, static_argnames=("tile_e", "max_onehot_nodes", "compute_dtype"))
def mlp_predictor_scores(h, src, dst, W1, b1, W2, b2, *,
                         tile_e=32768, max_onehot_nodes=512,
                         compute_dtype=jnp.float32):
    """Edge scores: W2(relu(W1(concat([h[src], h[dst]], 1)))).squeeze(1)."""
    N, H = h.shape
    E = src.shape[0]

    # ---- per-node W1 projections (plain JAX glue; N << E), bf16 up front ----
    W1_src = W1[:, :H]                                        # (H, H)
    W1_dst = W1[:, H:]                                        # (H, H)
    ps_t = (W1_src @ h.T + b1[:, None]).astype(jnp.bfloat16)  # (H, N), b1 folded
    pd_t = (W1_dst @ h.T).astype(jnp.bfloat16)                # (H, N)

    use_onehot = N <= int(max_onehot_nodes)

    # ---- edge tile: large & lane-dense, but keep >= 8 grid steps (v7x 2 TCs)
    #      and respect a VMEM budget for in-kernel intermediates -------------
    te = min(int(tile_e), max(128, _round_up(pl.cdiv(E, 8), 128)))
    if use_onehot:
        n_pad = _round_up(max(N, 1), 128)
        per_lane = 8 * n_pad + 12 * H + 32     # iota + 2 one-hots + f32 tmps + out/idx
    else:
        n_pad = 0
        per_lane = 20 * H + 8                  # 2x double-buffered bf16 in + f32 tmp + out
    budget = 20 * 1024 * 1024
    te = max(128, min(te, _round_down(max(budget // per_lane, 128), 128)))

    steps = pl.cdiv(E, te)
    e_out = steps * te                          # aligned output slab; tail sliced below

    vmem_need = te * per_lane + 4 * H * max(N, 1) + (1 << 20)
    vmem_limit = int(min(48 * 1024 * 1024, max(32 * 1024 * 1024, 2 * vmem_need)))
    cparams = pltpu.CompilerParams(
        dimension_semantics=("parallel",), vmem_limit_bytes=vmem_limit)

    if use_onehot:
        # Path A: node tables stay VMEM-resident; edges enter as int32 index
        # tiles and are gathered on the MXU via a one-hot matmul. HBM bytes per
        # edge ~ 2 int32 in + 1 f32 out (no (H, E) slab round-trip).
        ps_pad = jnp.pad(ps_t, ((0, 0), (0, n_pad - N)))      # (H, Np) — tiny
        pd_pad = jnp.pad(pd_t, ((0, 0), (0, n_pad - N)))
        src2 = src.astype(jnp.int32).reshape(1, E)
        dst2 = dst.astype(jnp.int32).reshape(1, E)
        w2_row = W2.reshape(1, H).astype(jnp.float32)
        out = pl.pallas_call(
            _edge_score_onehot_kernel,
            out_shape=jax.ShapeDtypeStruct((1, e_out), jnp.float32),
            grid_spec=pltpu.PrefetchScalarGridSpec(
                num_scalar_prefetch=0, grid=(steps,),
                in_specs=[
                    pl.BlockSpec((1, te), lambda i: (0, i)),
                    pl.BlockSpec((1, te), lambda i: (0, i)),
                    pl.BlockSpec((H, n_pad), lambda i: (0, 0)),   # resident table
                    pl.BlockSpec((H, n_pad), lambda i: (0, 0)),   # resident table
                    pl.BlockSpec((1, H), lambda i: (0, 0)),
                ],
                out_specs=pl.BlockSpec((1, te), lambda i: (0, i)),
            ),
            compiler_params=cparams,
        )(src2, dst2, ps_pad, pd_pad, w2_row)
    else:
        # Path B (fallback for large N): gather the per-edge columns in HBM
        # (already bf16 -> half-width slabs), stream lane-dense tiles, no pad:
        # the partial tail block's garbage lanes never cross lanes and are
        # sliced off below.
        xs = jnp.take(ps_t, src, axis=1)                      # (H, E) bf16
        xd = jnp.take(pd_t, dst, axis=1)                      # (H, E) bf16
        w2_row = W2.reshape(1, H).astype(compute_dtype)
        kern = functools.partial(_edge_score_stream_kernel,
                                 compute_dtype=compute_dtype)
        out = pl.pallas_call(
            kern,
            out_shape=jax.ShapeDtypeStruct((1, e_out), jnp.float32),
            grid_spec=pltpu.PrefetchScalarGridSpec(
                num_scalar_prefetch=0, grid=(steps,),
                in_specs=[
                    pl.BlockSpec((H, te), lambda i: (0, i)),
                    pl.BlockSpec((H, te), lambda i: (0, i)),
                    pl.BlockSpec((1, H), lambda i: (0, 0)),
                ],
                out_specs=pl.BlockSpec((1, te), lambda i: (0, i)),
            ),
            compiler_params=cparams,
        )(xs, xd, w2_row)

    return out[0, :E] + b2[0]                                 # (E,)  == squeeze(1)


def _reference(h, src, dst, W1, b1, W2, b2):
    x = jnp.concatenate([h[src], h[dst]], axis=1)
    hid = jnp.maximum(x @ W1.T + b1, 0.0)
    return (hid @ W2.T + b2)[:, 0]


if __name__ == "__main__":
    def run_case(num_nodes, num_edges, h_feats, **kw):
        key = jax.random.PRNGKey(0)
        k_h, k_src, k_dst, k_w1, k_b1, k_w2, k_b2 = jax.random.split(key, 7)

        h = jax.random.normal(k_h, (num_nodes, h_feats), dtype=jnp.float32)
        src = jax.random.randint(k_src, (num_edges,), 0, num_nodes, dtype=jnp.int32)
        dst = jax.random.randint(k_dst, (num_edges,), 0, num_nodes, dtype=jnp.int32)

        # Parameter shapes follow nn.Linear(h*2, h) and nn.Linear(h, 1).
        W1 = jax.random.normal(k_w1, (h_feats, 2 * h_feats), dtype=jnp.float32) * 0.1
        b1 = jax.random.normal(k_b1, (h_feats,), dtype=jnp.float32) * 0.1
        W2 = jax.random.normal(k_w2, (1, h_feats), dtype=jnp.float32) * 0.1
        b2 = jax.random.normal(k_b2, (1,), dtype=jnp.float32) * 0.1

        scores = jax.block_until_ready(
            mlp_predictor_scores(h, src, dst, W1, b1, W2, b2, **kw))
        ref = _reference(h, src, dst, W1, b1, W2, b2)
        # bf16 node/edge streams -> looser tolerance vs. the f32 reference.
        np.testing.assert_allclose(np.asarray(scores), np.asarray(ref),
                                   rtol=1e-2, atol=1e-2)
        assert scores.shape == (num_edges,)

    cdt = _default_compute_dtype()

    # Path A: VMEM-resident node tables + in-kernel one-hot gather (small N).
    run_case(16, 64, 32, compute_dtype=cdt)
    # Path B: HBM bf16 gather fallback, incl. a partial tail block (300 % 128 != 0).
    run_case(24, 300, 32, compute_dtype=cdt, max_onehot_nodes=0)

    print("KERNEL_OK")
</pallas_src>

<mosaic_0001>
module attributes {stable_mosaic.version = 11 : i64} {
  func.func @_edge_score_onehot_kernel(%arg0: i32, %arg1: memref<1x128xi32, #tpu.memory_space<vmem>>, %arg2: memref<1x128xi32, #tpu.memory_space<vmem>>, %arg3: memref<32x128xbf16, #tpu.memory_space<vmem>>, %arg4: memref<32x128xbf16, #tpu.memory_space<vmem>>, %arg5: memref<1x32xf32, #tpu.memory_space<vmem>>, %arg6: memref<1x128xf32, #tpu.memory_space<vmem>>) attributes {dimension_semantics = [#tpu.dimension_semantics<parallel>], iteration_bounds = array<i64: 1>, scalar_prefetch = 0 : i64, scratch_operands = 0 : i64, tpu.core_type = #tpu.core_type<tc>, window_params = [{transform_indices = @transform_0, window_bounds = array<i64: 1, 128>}, {transform_indices = @transform_1, window_bounds = array<i64: 1, 128>}, {pipeline_mode = #tpu.pipeline_mode<synchronous>, transform_indices = @transform_2, window_bounds = array<i64: 32, 128>}, {pipeline_mode = #tpu.pipeline_mode<synchronous>, transform_indices = @transform_3, window_bounds = array<i64: 32, 128>}, {pipeline_mode = #tpu.pipeline_mode<synchronous>, transform_indices = @transform_4, window_bounds = array<i64: 1, 32>}, {transform_indices = @transform_5, window_bounds = array<i64: 1, 128>}]} {
    %0 = tpu.iota {dimensions = array<i32: 0>} : vector<128x128xi32>
    %c0 = arith.constant 0 : index
    %c0_0 = arith.constant 0 : index
    %1 = vector.load %arg1[%c0, %c0_0] : memref<1x128xi32, #tpu.memory_space<vmem>>, vector<1x128xi32>
    %2 = vector.broadcast %1 : vector<1x128xi32> to vector<128x128xi32>
    %3 = arith.cmpi eq, %0, %2 : vector<128x128xi32>
    %4 = arith.extui %3 : vector<128x128xi1> to vector<128x128xi32>
    %5 = arith.sitofp %4 : vector<128x128xi32> to vector<128x128xf32>
    %6 = arith.truncf %5 : vector<128x128xf32> to vector<128x128xbf16>
    %c0_1 = arith.constant 0 : index
    %c0_2 = arith.constant 0 : index
    %7 = vector.load %arg2[%c0_1, %c0_2] : memref<1x128xi32, #tpu.memory_space<vmem>>, vector<1x128xi32>
    %8 = vector.broadcast %7 : vector<1x128xi32> to vector<128x128xi32>
    %9 = arith.cmpi eq, %0, %8 : vector<128x128xi32>
    %10 = arith.extui %9 : vector<128x128xi1> to vector<128x128xi32>
    %11 = arith.sitofp %10 : vector<128x128xi32> to vector<128x128xf32>
    %12 = arith.truncf %11 : vector<128x128xf32> to vector<128x128xbf16>
    %c0_3 = arith.constant 0 : index
    %c0_4 = arith.constant 0 : index
    %13 = vector.load %arg3[%c0_3, %c0_4] : memref<32x128xbf16, #tpu.memory_space<vmem>>, vector<32x128xbf16>
    %cst = arith.constant dense<0.000000e+00> : vector<32x128xf32>
    %14 = tpu.matmul %13, %6, %cst {dimension_numbers = #tpu.dot_dimension_numbers<[1], [0], [0], [1], [0, 0, 1, 1], [], []>} : vector<32x128xbf16>, vector<128x128xbf16>, vector<32x128xf32> -> vector<32x128xf32>
    %c0_5 = arith.constant 0 : index
    %c0_6 = arith.constant 0 : index
    %15 = vector.load %arg4[%c0_5, %c0_6] : memref<32x128xbf16, #tpu.memory_space<vmem>>, vector<32x128xbf16>
    %cst_7 = arith.constant dense<0.000000e+00> : vector<32x128xf32>
    %16 = tpu.matmul %15, %12, %cst_7 {dimension_numbers = #tpu.dot_dimension_numbers<[1], [0], [0], [1], [0, 0, 1, 1], [], []>} : vector<32x128xbf16>, vector<128x128xbf16>, vector<32x128xf32> -> vector<32x128xf32>
    %17 = arith.addf %14, %16 : vector<32x128xf32>
    %cst_8 = arith.constant 0.000000e+00 : f32
    %18 = vector.broadcast %cst_8 : f32 to vector<32x128xf32>
    %19 = arith.maximumf %17, %18 : vector<32x128xf32>
    %c0_9 = arith.constant 0 : index
    %c0_10 = arith.constant 0 : index
    %20 = vector.load %arg5[%c0_9, %c0_10] : memref<1x32xf32, #tpu.memory_space<vmem>>, vector<1x32xf32>
    %cst_11 = arith.constant dense<0.000000e+00> : vector<1x128xf32>
    %21 = tpu.matmul %20, %19, %cst_11 {dimension_numbers = #tpu.dot_dimension_numbers<[1], [0], [0], [1], [0, 0, 1, 1], [], []>} : vector<1x32xf32>, vector<32x128xf32>, vector<1x128xf32> -> vector<1x128xf32>
    %c0_12 = arith.constant 0 : index
    %c0_13 = arith.constant 0 : index
    %22 = vector.load %arg6[%c0_12, %c0_13] : memref<1x128xf32, #tpu.memory_space<vmem>>, vector<1x128xf32>
    tpu.vector_store %arg6[%c0_12, %c0_13], %21 {strides = array<i32>} : memref<1x128xf32, #tpu.memory_space<vmem>>, vector<1x128xf32>,
    return
  }
  func.func @transform_0(%arg0: i32) -> (i32, i32) {
    %c0_i32 = arith.constant 0 : i32
    %c0_i32_0 = arith.constant 0 : i32
    return %c0_i32, %arg0 : i32, i32
  }
  func.func @transform_1(%arg0: i32) -> (i32, i32) {
    %c0_i32 = arith.constant 0 : i32
    %c0_i32_0 = arith.constant 0 : i32
    return %c0_i32, %arg0 : i32, i32
  }
  func.func @transform_2(%arg0: i32) -> (i32, i32) {
    %c0_i32 = arith.constant 0 : i32
    %c0_i32_0 = arith.constant 0 : i32
    %c0_i32_1 = arith.constant 0 : i32
    return %c0_i32, %c0_i32_0 : i32, i32
  }
  func.func @transform_3(%arg0: i32) -> (i32, i32) {
    %c0_i32 = arith.constant 0 : i32
    %c0_i32_0 = arith.constant 0 : i32
    %c0_i32_1 = arith.constant 0 : i32
    return %c0_i32, %c0_i32_0 : i32, i32
  }
  func.func @transform_4(%arg0: i32) -> (i32, i32) {
    %c0_i32 = arith.constant 0 : i32
    %c0_i32_0 = arith.constant 0 : i32
    %c0_i32_1 = arith.constant 0 : i32
    return %c0_i32, %c0_i32_0 : i32, i32
  }
  func.func @transform_5(%arg0: i32) -> (i32, i32) {
    %c0_i32 = arith.constant 0 : i32
    %c0_i32_0 = arith.constant 0 : i32
    return %c0_i32, %arg0 : i32, i32
  }
}

</mosaic_0001>

<llo_original>
// kernel: mlp_predictor_scores.1
$region0: #{mlp_predictor_scores.1}
  #allocation0 [shape = 'u32[]', space=smem, size = 0x4, offset = 0x4, fixed_abs, tag = 'smem constant byte address 0x4 - core index']
  #allocation1 [shape = 'u32[144,128]{1,0:T(1,128)}', space=vmem, size = 0x12000, scoped, tag = 'internal scratch']
  %s0 = inlined_call_operand.vmem [shape: s32[1,64], index: 0, kind: input, shape index: {}]
  %s1 = inlined_call_operand.vmem [shape: s32[1,64], index: 1, kind: input, shape index: {}]
  %s2 = inlined_call_operand.vmem [shape: bf16[32,128], index: 2, kind: input, shape index: {}]
  %s3 = inlined_call_operand.vmem [shape: bf16[32,128], index: 3, kind: input, shape index: {}]
  %s4 = inlined_call_operand.vmem [shape: f32[1,32], index: 4, kind: input, shape index: {}]
  %s5 = inlined_call_operand.vmem [shape: f32[1,128], index: 5, kind: output, shape index: {}]
  %s6 = sld [smem:[#allocation0]]
  $region30: #{mlp_predictor_scores.1} parent=0
    _
  %s8 = ssub.s32 1, %s6
  %s9 = scalar_select 0, %s8, %s6
  // Predicated region
  $region2: #{mlp_predictor_scores.1} parent=0 // pred_check
    _
  $region3: #{mlp_predictor_scores.1} parent=0 // pred_check_branch
    %11 = sbr.rel (0) target = $region5
  $region4: #{mlp_predictor_scores.1} parent=0 // pred_region
    _
  $region5: #{mlp_predictor_scores.1} parent=0 // pred_fallthru
    _
  // Predicated region
  $region6: #{mlp_predictor_scores.1} parent=0 // pred_check
    _
  $region7: #{mlp_predictor_scores.1} parent=0 // pred_check_branch
    %13 = sbr.rel (0) target = $region9
  $region8: #{mlp_predictor_scores.1} parent=0 // pred_region
    _
  $region9: #{mlp_predictor_scores.1} parent=0 // pred_fallthru
    _
  // Predicated region
  $region10: #{mlp_predictor_scores.1} parent=0 // pred_check
    _
  $region11: #{mlp_predictor_scores.1} parent=0 // pred_check_branch
    %15 = sbr.rel (0) target = $region13
  $region12: #{mlp_predictor_scores.1} parent=0 // pred_region
    _
  $region13: #{mlp_predictor_scores.1} parent=0 // pred_fallthru
    _
  // Predicated region
  $region14: #{mlp_predictor_scores.1} parent=0 // pred_check
    _
  $region15: #{mlp_predictor_scores.1} parent=0 // pred_check_branch
    %17 = sbr.rel (0) target = $region17
  $region16: #{mlp_predictor_scores.1} parent=0 // pred_region
    _
  $region17: #{mlp_predictor_scores.1} parent=0 // pred_fallthru
    _
  // Predicated region
  $region18: #{mlp_predictor_scores.1} parent=0 // pred_check
    _
  $region19: #{mlp_predictor_scores.1} parent=0 // pred_check_branch
    %19 = sbr.rel (0) target = $region21
  $region20: #{mlp_predictor_scores.1} parent=0 // pred_region
    _
  $region21: #{mlp_predictor_scores.1} parent=0 // pred_fallthru
    _
  %v21 = vlaneseq
  %v22 = vshrl.u32 %v21, 7
  %v23 = vadd.s32 %v22, 8
  %v24 = vadd.s32 %v22, 16
  %v25 = vadd.s32 %v22, 24
  %v26 = vadd.s32 %v22, 32
  %v27 = vadd.s32 %v22, 40
  %v28 = vadd.s32 %v22, 48
  %v29 = vadd.s32 %v22, 56
  %v30 = vadd.s32 %v22, 64
  %v31 = vadd.s32 %v22, 72
  %v32 = vadd.s32 %v22, 80
  %v33 = vadd.s32 %v22, 88
  %v34 = vadd.s32 %v22, 96
  %v35 = vadd.s32 %v22, 104
  %v36 = vadd.s32 %v22, 112
  %v37 = vadd.s32 %v22, 120
  %v38 = vld [vmem:[%s0] sm:$0x1]
  %v39 = vlaneseq
  %v40 = vshrl.u32 %v39, 7
  %v41 = vsub.s32 0, %v40
  %v42 = vrot.slane %v38, %v41
  %vm43 = vcmp.eq.s32.totalorder %v22, %v42
  %vm44 = vcmp.eq.s32.totalorder %v23, %v42
  %vm45 = vcmp.eq.s32.totalorder %v24, %v42
  %vm46 = vcmp.eq.s32.totalorder %v25, %v42
  %vm47 = vcmp.eq.s32.totalorder %v26, %v42
  %vm48 = vcmp.eq.s32.totalorder %v27, %v42
  %vm49 = vcmp.eq.s32.totalorder %v28, %v42
  %vm50 = vcmp.eq.s32.totalorder %v29, %v42
  %vm51 = vcmp.eq.s32.totalorder %v30, %v42
  %vm52 = vcmp.eq.s32.totalorder %v31, %v42
  %vm53 = vcmp.eq.s32.totalorder %v32, %v42
  %vm54 = vcmp.eq.s32.totalorder %v33, %v42
  %vm55 = vcmp.eq.s32.totalorder %v34, %v42
  %vm56 = vcmp.eq.s32.totalorder %v35, %v42
  %vm57 = vcmp.eq.s32.totalorder %v36, %v42
  %vm58 = vcmp.eq.s32.totalorder %v37, %v42
  %v59 = vsel %vm43, 1, 0
  %v60 = vsel %vm44, 1, 0
  %v61 = vsel %vm45, 1, 0
  %v62 = vsel %vm46, 1, 0
  %v63 = vsel %vm47, 1, 0
  %v64 = vsel %vm48, 1, 0
  %v65 = vsel %vm49, 1, 0
  %v66 = vsel %vm50, 1, 0
  %v67 = vsel %vm51, 1, 0
  %v68 = vsel %vm52, 1, 0
  %v69 = vsel %vm53, 1, 0
  %v70 = vsel %vm54, 1, 0
  %v71 = vsel %vm55, 1, 0
  %v72 = vsel %vm56, 1, 0
  %v73 = vsel %vm57, 1, 0
  %v74 = vsel %vm58, 1, 0
  %v75 = vcvt.s32.f32 %v59
  %v76 = vcvt.s32.f32 %v60
  %v77 = vcvt.s32.f32 %v61
  %v78 = vcvt.s32.f32 %v62
  %v79 = vcvt.s32.f32 %v63
  %v80 = vcvt.s32.f32 %v64
  %v81 = vcvt.s32.f32 %v65
  %v82 = vcvt.s32.f32 %v66
  %v83 = vcvt.s32.f32 %v67
  %v84 = vcvt.s32.f32 %v68
  %v85 = vcvt.s32.f32 %v69
  %v86 = vcvt.s32.f32 %v70
  %v87 = vcvt.s32.f32 %v71
  %v88 = vcvt.s32.f32 %v72
  %v89 = vcvt.s32.f32 %v73
  %v90 = vcvt.s32.f32 %v74
  %v91 = vpack.c.bf16 %v76, %v75
  %v92 = vpack.c.bf16 %v78, %v77
  %v93 = vpack.c.bf16 %v80, %v79
  %v94 = vpack.c.bf16 %v82, %v81
  %v95 = vpack.c.bf16 %v84, %v83
  %v96 = vpack.c.bf16 %v86, %v85
  %v97 = vpack.c.bf16 %v88, %v87
  %v98 = vpack.c.bf16 %v90, %v89
  %v99 = vld [vmem:[%s1] sm:$0x1]
  %v100 = vlaneseq
  %v101 = vshrl.u32 %v100, 7
  %v102 = vsub.s32 0, %v101
  %v103 = vrot.slane %v99, %v102
  %vm104 = vcmp.eq.s32.totalorder %v22, %v103
  %vm105 = vcmp.eq.s32.totalorder %v23, %v103
  %vm106 = vcmp.eq.s32.totalorder %v24, %v103
  %vm107 = vcmp.eq.s32.totalorder %v25, %v103
  %vm108 = vcmp.eq.s32.totalorder %v26, %v103
  %vm109 = vcmp.eq.s32.totalorder %v27, %v103
  %vm110 = vcmp.eq.s32.totalorder %v28, %v103
  %vm111 = vcmp.eq.s32.totalorder %v29, %v103
  %vm112 = vcmp.eq.s32.totalorder %v30, %v103
  %vm113 = vcmp.eq.s32.totalorder %v31, %v103
  %vm114 = vcmp.eq.s32.totalorder %v32, %v103
  %vm115 = vcmp.eq.s32.totalorder %v33, %v103
  %vm116 = vcmp.eq.s32.totalorder %v34, %v103
  %vm117 = vcmp.eq.s32.totalorder %v35, %v103
  %vm118 = vcmp.eq.s32.totalorder %v36, %v103
  %vm119 = vcmp.eq.s32.totalorder %v37, %v103
  %v120 = vsel %vm104, 1, 0
  %v121 = vsel %vm105, 1, 0
  %v122 = vsel %vm106, 1, 0
  %v123 = vsel %vm107, 1, 0
  %v124 = vsel %vm108, 1, 0
  %v125 = vsel %vm109, 1, 0
  %v126 = vsel %vm110, 1, 0
  %v127 = vsel %vm111, 1, 0
  %v128 = vsel %vm112, 1, 0
  %v129 = vsel %vm113, 1, 0
  %v130 = vsel %vm114, 1, 0
  %v131 = vsel %vm115, 1, 0
  %v132 = vsel %vm116, 1, 0
  %v133 = vsel %vm117, 1, 0
  %v134 = vsel %vm118, 1, 0
  %v135 = vsel %vm119, 1, 0
  %v136 = vcvt.s32.f32 %v120
  %v137 = vcvt.s32.f32 %v121
  %v138 = vcvt.s32.f32 %v122
  %v139 = vcvt.s32.f32 %v123
  %v140 = vcvt.s32.f32 %v124
  %v141 = vcvt.s32.f32 %v125
  %v142 = vcvt.s32.f32 %v126
  %v143 = vcvt.s32.f32 %v127
  %v144 = vcvt.s32.f32 %v128
  %v145 = vcvt.s32.f32 %v129
  %v146 = vcvt.s32.f32 %v130
  %v147 = vcvt.s32.f32 %v131
  %v148 = vcvt.s32.f32 %v132
  %v149 = vcvt.s32.f32 %v133
  %v150 = vcvt.s32.f32 %v134
  %v151 = vcvt.s32.f32 %v135
  %v152 = vpack.c.bf16 %v137, %v136
  %v153 = vpack.c.bf16 %v139, %v138
  %v154 = vpack.c.bf16 %v141, %v140
  %v155 = vpack.c.bf16 %v143, %v142
  %v156 = vpack.c.bf16 %v145, %v144
  %v157 = vpack.c.bf16 %v147, %v146
  %v158 = vpack.c.bf16 %v149, %v148
  %v159 = vpack.c.bf16 %v151, %v150
  %v160 = vld [vmem:[%s2] sm:$0xf]
  %v161 = vld [vmem:[%s2 + $0x4] sm:$0xf]
  %v162 = vld [vmem:[%s2 + $0x8] sm:$0xf]
  %v163 = vld [vmem:[%s2 + $0xc] sm:$0xf]
  %v164 = vld [vmem:[%s3] sm:$0xf]
  %v165 = vld [vmem:[%s3 + $0x4] sm:$0xf]
  %v166 = vld [vmem:[%s3 + $0x8] sm:$0xf]
  %v167 = vld [vmem:[%s3 + $0xc] sm:$0xf]
  %v172 = vunpack.c.l.b16 %v164
  %v173 = vunpack.c.l.b16 %v165
  %v174 = vunpack.c.l.b16 %v166
  %v175 = vunpack.c.l.b16 %v167
  %v176 = vpack.c.b16 %v173, %v172
  %v177 = vpack.c.b16 %v175, %v174
  %180 = vmatprep.subr.bf16.mxu0 0
  %181 = vmatpush1.bf16.msra.mxu0 %v159
  %182 = vmatprep.subr.bf16.mxu0 0
  %183 = vmatpush1.bf16.msra.mxu0 %v158
  %184 = vmatprep.subr.bf16.mxu0 0
  %185 = vmatpush1.bf16.msra.mxu0 %v157
  %186 = vmatprep.subr.bf16.mxu0 0
  %187 = vmatpush1.bf16.msra.mxu0 %v156
  %188 = vmatprep.subr.bf16.mxu0 0
  %189 = vmatpush1.bf16.msra.mxu0 %v155
  %190 = vmatprep.subr.bf16.mxu0 0
  %191 = vmatpush1.bf16.msra.mxu0 %v154
  %192 = vmatprep.subr.bf16.mxu0 0
  %193 = vmatpush1.bf16.msra.mxu0 %v153
  %194 = vmatprep.subr.bf16.mxu0 0
  %195 = vmatpush1.bf16.msra.mxu0 %v152
  %196 = vmatprep.subr.bf16.mxu0 0
  %197 = vmatpush2.bf16.msra.mxu0 0
  %198 = vmatprep.subr.bf16.mxu0 0
  %199 = vmatpush2.bf16.msra.mxu0 0
  %200 = vmatprep.subr.bf16.mxu0 0
  %201 = vmatpush2.bf16.msra.mxu0 0
  %202 = vmatprep.subr.bf16.mxu0 0
  %203 = vmatpush2.bf16.msra.mxu0 0
  %204 = vmatprep.subr.bf16.mxu0 0
  %205 = vmatpush2.bf16.msra.mxu0 0
  %206 = vmatprep.subr.bf16.mxu0 0
  %207 = vmatpush2.bf16.msra.mxu0 0
  %208 = vmatprep.subr.bf16.mxu0 0
  %209 = vmatpush2.bf16.msra.mxu0 0
  %210 = vmatprep.subr.bf16.mxu0 0
  %211 = vmatpush2.bf16.msra.mxu0 0
  %212 = vmatprep.mubr.bf16.mxu0 0
  %213 = vmatmul.mubr.bf16.gmra.mxu0 %v176
  %v214 = vpop.f32.mrf.mxu0
  %v215 = vadd.f32 0.0, %v214
  %v216 = vpop.f32.mrf.mxu0
  %v217 = vpop.f32.mrf.mxu0
  %v218 = vadd.f32 0.0, %v217
  %v219 = vpop.f32.mrf.mxu0
  %220 = vmatprep.mubr.bf16.mxu0 0
  %221 = vmatmul.mubr.bf16.gmra.mxu0 %v177
  %v222 = vpop.f32.mrf.mxu0
  %v223 = vadd.f32 0.0, %v222
  %v224 = vpop.f32.mrf.mxu0
  %v225 = vpop.f32.mrf.mxu0
  %v226 = vadd.f32 0.0, %v225
  %v227 = vpop.f32.mrf.mxu0
  %228 = vdwg.mxu0
  %v233 = vunpack.c.l.b16 %v160
  %v234 = vunpack.c.l.b16 %v161
  %v235 = vunpack.c.l.b16 %v162
  %v236 = vunpack.c.l.b16 %v163
  %v237 = vpack.c.b16 %v234, %v233
  %v238 = vpack.c.b16 %v236, %v235
  %241 = vmatprep.subr.bf16.mxu0 0
  %242 = vmatpush1.bf16.msra.mxu0 %v98
  %243 = vmatprep.subr.bf16.mxu0 0
  %244 = vmatpush1.bf16.msra.mxu0 %v97
  %245 = vmatprep.subr.bf16.mxu0 0
  %246 = vmatpush1.bf16.msra.mxu0 %v96
  %247 = vmatprep.subr.bf16.mxu0 0
  %248 = vmatpush1.bf16.msra.mxu0 %v95
  %249 = vmatprep.subr.bf16.mxu0 0
  %250 = vmatpush1.bf16.msra.mxu0 %v94
  %251 = vmatprep.subr.bf16.mxu0 0
  %252 = vmatpush1.bf16.msra.mxu0 %v93
  %253 = vmatprep.subr.bf16.mxu0 0
  %254 = vmatpush1.bf16.msra.mxu0 %v92
  %255 = vmatprep.subr.bf16.mxu0 0
  %256 = vmatpush1.bf16.msra.mxu0 %v91
  %257 = vmatprep.subr.bf16.mxu0 0
  %258 = vmatpush2.bf16.msra.mxu0 0
  %259 = vmatprep.subr.bf16.mxu0 0
  %260 = vmatpush2.bf16.msra.mxu0 0
  %261 = vmatprep.subr.bf16.mxu0 0
  %262 = vmatpush2.bf16.msra.mxu0 0
  %263 = vmatprep.subr.bf16.mxu0 0
  %264 = vmatpush2.bf16.msra.mxu0 0
  %265 = vmatprep.subr.bf16.mxu0 0
  %266 = vmatpush2.bf16.msra.mxu0 0
  %267 = vmatprep.subr.bf16.mxu0 0
  %268 = vmatpush2.bf16.msra.mxu0 0
  %269 = vmatprep.subr.bf16.mxu0 0
  %270 = vmatpush2.bf16.msra.mxu0 0
  %271 = vmatprep.subr.bf16.mxu0 0
  %272 = vmatpush2.bf16.msra.mxu0 0
  %273 = vmatprep.mubr.bf16.mxu0 0
  %274 = vmatmul.mubr.bf16.gmra.mxu0 %v237
  %v275 = vpop.f32.mrf.mxu0
  %v276 = vadd.f32 %v215, %v275
  %v277 = vpop.f32.mrf.mxu0
  %v278 = vpop.f32.mrf.mxu0
  %v279 = vadd.f32 %v218, %v278
  %v280 = vpop.f32.mrf.mxu0
  %281 = vmatprep.mubr.bf16.mxu0 0
  %282 = vmatmul.mubr.bf16.gmra.mxu0 %v238
  %v283 = vpop.f32.mrf.mxu0
  %v284 = vadd.f32 %v223, %v283
  %v285 = vpop.f32.mrf.mxu0
  %v286 = vpop.f32.mrf.mxu0
  %v287 = vadd.f32 %v226, %v286
  %v288 = vpop.f32.mrf.mxu0
  %289 = vdwg.mxu0
  %v290 = vmax.f32 %v276, 0.0
  %v291 = vmax.f32 %v279, 0.0
  %v292 = vmax.f32 %v284, 0.0
  %v293 = vmax.f32 %v287, 0.0
  %v294 = vld [vmem:[%s4] sm:$0x1]
  %vm295 = vcmask 261120
  %v297 = vsel %vm295, %v294, 0
  %299 = vmatprep.subr.mxu0 0.0
  %300 = vmatpush1.msra.mxu0 0.0
  %301 = vmatprep.subr.mxu0 0.0
  %302 = vmatpush1.msra.mxu0 0.0
  %303 = vmatprep.subr.mxu0 0.0
  %304 = vmatpush1.msra.mxu0 0.0
  %305 = vmatprep.subr.mxu0 0.0
  %306 = vmatpush1.msra.mxu0 0.0
  %307 = vmatprep.subr.mxu0 0.0
  %308 = vmatpush1.msra.mxu0 0.0
  %309 = vmatprep.subr.mxu0 0.0
  %310 = vmatpush1.msra.mxu0 0.0
  %311 = vmatprep.subr.mxu0 0.0
  %312 = vmatpush1.msra.mxu0 0.0
  %313 = vmatprep.subr.mxu0 0.0
  %314 = vmatpush1.msra.mxu0 0.0
  %315 = vmatprep.subr.mxu0 0.0
  %316 = vmatpush1.msra.mxu0 0.0
  %317 = vmatprep.subr.mxu0 0.0
  %318 = vmatpush1.msra.mxu0 0.0
  %319 = vmatprep.subr.mxu0 0.0
  %320 = vmatpush1.msra.mxu0 0.0
  %321 = vmatprep.subr.mxu0 0.0
  %322 = vmatpush1.msra.mxu0 0.0
  %323 = vmatprep.subr.mxu0 0.0
  %324 = vmatpush1.msra.mxu0 %v293
  %325 = vmatprep.subr.mxu0 0.0
  %326 = vmatpush1.msra.mxu0 %v292
  %327 = vmatprep.subr.mxu0 0.0
  %328 = vmatpush1.msra.mxu0 %v291
  %329 = vmatprep.subr.mxu0 0.0
  %330 = vmatpush1.msra.mxu0 %v290
  %331 = vmatprep.subr.mxu0 0.0
  %332 = vmatpush2.msra.mxu0 0.0
  %333 = vmatprep.subr.mxu0 0.0
  %334 = vmatpush2.msra.mxu0 0.0
  %335 = vmatprep.subr.mxu0 0.0
  %336 = vmatpush2.msra.mxu0 0.0
  %337 = vmatprep.subr.mxu0 0.0
  %338 = vmatpush2.msra.mxu0 0.0
  %339 = vmatprep.subr.mxu0 0.0
  %340 = vmatpush2.msra.mxu0 0.0
  %341 = vmatprep.subr.mxu0 0.0
  %342 = vmatpush2.msra.mxu0 0.0
  %343 = vmatprep.subr.mxu0 0.0
  %344 = vmatpush2.msra.mxu0 0.0
  %345 = vmatprep.subr.mxu0 0.0
  %346 = vmatpush2.msra.mxu0 0.0
  %347 = vmatprep.subr.mxu0 0.0
  %348 = vmatpush2.msra.mxu0 0.0
  %349 = vmatprep.subr.mxu0 0.0
  %350 = vmatpush2.msra.mxu0 0.0
  %351 = vmatprep.subr.mxu0 0.0
  %352 = vmatpush2.msra.mxu0 0.0
  %353 = vmatprep.subr.mxu0 0.0
  %354 = vmatpush2.msra.mxu0 0.0
  %355 = vmatprep.subr.mxu0 0.0
  %356 = vmatpush2.msra.mxu0 0.0
  %357 = vmatprep.subr.mxu0 0.0
  %358 = vmatpush2.msra.mxu0 0.0
  %359 = vmatprep.subr.mxu0 0.0
  %360 = vmatpush2.msra.mxu0 0.0
  %361 = vmatprep.subr.mxu0 0.0
  %362 = vmatpush2.msra.mxu0 0.0
  %363 = vmatprep.mubr.f32.mxu0 0.0
  %364 = vmatmul.mubr.f32.gmra.mxu0 %v297
  %v365 = vpop.f32.mrf.mxu0
  %v366 = vadd.f32 0.0, %v365
  %v367 = vpop.f32.mrf.mxu0
  %368 = vdwg.mxu0
  %369 = vst [vmem:[%s5] sm:$0x1] %v366
  // Predicated region
  $region22: #{mlp_predictor_scores.1} parent=0 // pred_check
    _
  $region23: #{mlp_predictor_scores.1} parent=0 // pred_check_branch
    %371 = sbr.rel (0) target = $region25
  $region24: #{mlp_predictor_scores.1} parent=0 // pred_region
    _
  $region25: #{mlp_predictor_scores.1} parent=0 // pred_fallthru
    _
  // Predicated region
  $region26: #{mlp_predictor_scores.1} parent=0 // pred_check
    _
  $region27: #{mlp_predictor_scores.1} parent=0 // pred_check_branch
    %373 = sbr.rel (0) target = $region29
  $region28: #{mlp_predictor_scores.1} parent=0 // pred_region
    _
  $region29: #{mlp_predictor_scores.1} parent=0 // pred_fallthru
    _

</llo_original>
